<compile_context>
chip_gen: v7x
topology: tpu7x:2x2x1
jax: 0.10.0
libtpu: 0.0.40
codegen_flags: <defaults>
</compile_context>

<pallas_src>
import jax
import jax.numpy as jnp
from jax.experimental import pallas as pl
from jax.experimental.pallas import tpu as pltpu

LANE = 128  # TPU lane width; head dims and outputs are padded to this.


def _round_up(n, m):
    return ((n + m - 1) // m) * m


def _cdiv(a, b):
    return -(-a // b)


# ---------------------------------------------------------------------------
# Parameter preparation: fold GAP + encoder-linear + fc1 into a single weight.
# ---------------------------------------------------------------------------
def pack_params(params, hw):
    """Prepare lane-padded, MXU-ready parameter tensors.

    Returns a dict of:
      w01 : (C*HW, 128) bf16  -- GAP (/HW, repeated) folded into enc_w, then
                                 folded into fc1_w (both purely linear).
      w2  : (128, 128) bf16   -- fc_out weight, zero-padded.
      b   : (8, 128)  f32     -- row 0: b01 = enc_b @ fc1_w + fc1_b, row 1: fc_out_b.
    All padding lanes/rows are zero, so padded lanes stay exactly zero through
    every matmul / bias-add / ReLU.
    """
    enc_w = params["enc_w"].astype(jnp.float32)          # (C, E)
    enc_b = params["enc_b"].reshape(-1).astype(jnp.float32)
    fc1_w = params["fc1_w"].astype(jnp.float32)          # (E, Hd)
    fc1_b = params["fc1_b"].reshape(-1).astype(jnp.float32)
    fco_w = params["fc_out_w"].astype(jnp.float32)       # (Hd, NC)
    fco_b = params["fc_out_b"].reshape(-1).astype(jnp.float32)

    C, E = enc_w.shape
    Hd = fc1_w.shape[1]
    NC = fco_w.shape[1]
    assert Hd <= LANE and NC <= LANE, "head dims must fit in 128 lanes"

    K0 = C * hw
    # GAP folded into the encoder weights, encoder folded into fc1 (f32 math).
    w0 = jnp.repeat(enc_w / float(hw), hw, axis=0)       # (K0, E)
    w01 = w0 @ fc1_w                                     # (K0, Hd)
    b01 = enc_b @ fc1_w + fc1_b                          # (Hd,)

    w01_p = jnp.zeros((K0, LANE), jnp.bfloat16).at[:, :Hd].set(
        w01.astype(jnp.bfloat16))
    w2_p = jnp.zeros((LANE, LANE), jnp.bfloat16).at[:Hd, :NC].set(
        fco_w.astype(jnp.bfloat16))
    b_p = jnp.zeros((8, LANE), jnp.float32)
    b_p = b_p.at[0, :Hd].set(b01)
    b_p = b_p.at[1, :NC].set(fco_b)
    return {"w01": w01_p, "w2": w2_p, "b": b_p}


# ---------------------------------------------------------------------------
# Kernel: two bf16 MXU matmuls with f32 accumulation, fused bias + ReLU.
# ---------------------------------------------------------------------------
def _sa_har_kernel(x_ref, w01_ref, w2_ref, b_ref, out_ref):
    x = x_ref[...]                                       # (TB, K0) bf16
    b01 = b_ref[0:1, :]                                  # (1, 128) f32
    b2 = b_ref[1:2, :]                                   # (1, 128) f32

    # encoder(GAP+linear) + fc1 folded:  h = relu(x @ w01 + b01)
    h = jnp.dot(x, w01_ref[...], preferred_element_type=jnp.float32) + b01
    h = jnp.maximum(h, 0.0).astype(jnp.bfloat16)         # ReLU; dropout = identity (eval)
    # fc_out
    out_ref[...] = (
        jnp.dot(h, w2_ref[...], preferred_element_type=jnp.float32) + b2)


def _choose_tile(B, K0):
    """Batch tile: 8-row aligned, evenly split, >=2 tiles when possible
    (dual-TC on v7x), bounded by a conservative VMEM budget."""
    if B <= 8:
        return B                                # single tiny tile (block == full dim)
    n_tiles = max(2, _cdiv(B, 256))             # ~256-row tiles, split evenly
    tb = _round_up(_cdiv(B, n_tiles), 8)

    budget = 24 * 1024 * 1024                   # headroom inside v7x's 64 MiB VMEM

    def vmem_use(t):
        return (2 * t * K0 * 2                  # x tiles, bf16, double-buffered
                + 2 * t * LANE * 4              # out tiles, f32, double-buffered
                + 2 * (K0 + LANE) * LANE * 2    # w01 + w2 (bf16, default 2 buffers)
                + 2 * 8 * LANE * 4)             # biases

    while tb > 8 and vmem_use(tb) > budget:
        tb = _round_up(tb // 2, 8)
    return tb


def sa_har_classifier(x_nchw, packed, *, num_classes):
    """x_nchw: [B, C, H, W] float. Returns logits [B, num_classes] (f32)."""
    B, C, H, W = x_nchw.shape
    K0 = C * H * W
    w01, w2, b = packed["w01"], packed["w2"], packed["b"]
    assert w01.shape[0] == K0, "packed params do not match input C*H*W"
    assert num_classes <= LANE

    TB = _choose_tile(B, K0)
    n_tiles = _cdiv(B, TB)

    # bf16 activations halve the dominant HBM stream (feed bf16 directly in a
    # fused pipeline to avoid even this conversion pass).
    x_flat = x_nchw.reshape(B, K0).astype(jnp.bfloat16)

    out = pl.pallas_call(
        _sa_har_kernel,
        # Output slab padded to a whole number of tiles -> unmasked stores;
        # garbage rows of the ragged last tile are sliced off below.
        out_shape=jax.ShapeDtypeStruct((n_tiles * TB, LANE), jnp.float32),
        grid=(n_tiles,),
        in_specs=[
            pl.BlockSpec((TB, K0), lambda i: (i, 0)),      # batch-tiled activations
            # Constant index maps -> each param DMA'd once for the whole grid.
            pl.BlockSpec((K0, LANE), lambda i: (0, 0)),    # folded enc+fc1 weight
            pl.BlockSpec((LANE, LANE), lambda i: (0, 0)),  # fc_out weight
            pl.BlockSpec((8, LANE), lambda i: (0, 0)),     # biases (f32)
        ],
        out_specs=pl.BlockSpec((TB, LANE), lambda i: (i, 0)),  # lane-dense output
        compiler_params=pltpu.CompilerParams(
            dimension_semantics=("parallel",),             # shard batch tiles (v7x 2 TCs)
            vmem_limit_bytes=32 * 1024 * 1024,
        ),
    )(x_flat, w01, w2, b)

    return out[:B, :num_classes]


# ---------------------------------------------------------------------------
# Init + pure-JAX reference (unfolded, f32) for correctness checking.
# ---------------------------------------------------------------------------
def init_params(key, in_channels, embedding_dim, num_classes):
    """Deterministic init matching the PyTorch Linear shapes (U(-1/sqrt(fan_in), ..))."""
    ks = jax.random.split(key, 6)
    hidden = 4 * num_classes

    def lin(kw, kb, fan_in, fan_out):
        bound = 1.0 / jnp.sqrt(fan_in)
        w = jax.random.uniform(kw, (fan_in, fan_out), jnp.float32, -bound, bound)
        b = jax.random.uniform(kb, (1, fan_out), jnp.float32, -bound, bound)
        return w, b

    enc_w, enc_b = lin(ks[0], ks[1], in_channels, embedding_dim)
    fc1_w, fc1_b = lin(ks[2], ks[3], embedding_dim, hidden)
    fco_w, fco_b = lin(ks[4], ks[5], hidden, num_classes)
    return {"enc_w": enc_w, "enc_b": enc_b,
            "fc1_w": fc1_w, "fc1_b": fc1_b,
            "fc_out_w": fco_w, "fc_out_b": fco_b}


def _reference(x_nchw, p):
    """Plain-JAX f32 reference of the same forward pass."""
    B, C, H, W = x_nchw.shape
    pooled = x_nchw.reshape(B, C, H * W).mean(-1)
    feats = pooled @ p["enc_w"] + p["enc_b"]
    h = jnp.maximum(feats @ p["fc1_w"] + p["fc1_b"], 0.0)
    return h @ p["fc_out_w"] + p["fc_out_b"]


def _check(out, ref, name):
    max_err = float(jnp.max(jnp.abs(out - ref)))
    # Tolerance accounts for the bf16 activation/weight path and the change in
    # summation order from folding GAP + enc + fc1 into one long f32-accumulated dot.
    assert jnp.allclose(out, ref, atol=2e-2, rtol=2e-2), \
        f"{name}: mismatch vs reference (max abs err {max_err})"


if __name__ == "__main__":
    key = jax.random.PRNGKey(0)
    k_x, k_x2, k_p = jax.random.split(key, 3)

    B, C, H, W = 2, 4, 16, 16          # small NCHW sensor-image input
    embedding_dim = 32                  # encoder.get_embedding_dim()
    num_classes = 6                     # HAR classes

    x = jax.random.normal(k_x, (B, C, H, W), jnp.float32)
    params = init_params(k_p, C, embedding_dim, num_classes)
    packed = pack_params(params, H * W)

    out = sa_har_classifier(x, packed, num_classes=num_classes)
    out = jax.block_until_ready(out)
    assert out.shape == (B, num_classes)
    _check(out, _reference(x, params), "B=2")

    # Second shape exercising the multi-tile / ragged-last-tile path.
    B2 = 40
    x2 = jax.random.normal(k_x2, (B2, C, H, W), jnp.float32)
    out2 = jax.block_until_ready(
        sa_har_classifier(x2, packed, num_classes=num_classes))
    assert out2.shape == (B2, num_classes)
    _check(out2, _reference(x2, params), "B=40")

    print("KERNEL_OK")
</pallas_src>

<mosaic_0001>
module attributes {stable_mosaic.version = 11 : i64} {
  func.func @_sa_har_kernel(%arg0: i32, %arg1: memref<2x1024xbf16, #tpu.memory_space<vmem>>, %arg2: memref<1024x128xbf16, #tpu.memory_space<vmem>>, %arg3: memref<128x128xbf16, #tpu.memory_space<vmem>>, %arg4: memref<8x128xf32, #tpu.memory_space<vmem>>, %arg5: memref<2x128xf32, #tpu.memory_space<vmem>>) attributes {dimension_semantics = [#tpu.dimension_semantics<parallel>], iteration_bounds = array<i64: 1>, scalar_prefetch = 0 : i64, scratch_operands = 0 : i64, tpu.core_type = #tpu.core_type<tc>, window_params = [{transform_indices = @transform_0, window_bounds = array<i64: 2, 1024>}, {pipeline_mode = #tpu.pipeline_mode<synchronous>, transform_indices = @transform_1, window_bounds = array<i64: 1024, 128>}, {pipeline_mode = #tpu.pipeline_mode<synchronous>, transform_indices = @transform_2, window_bounds = array<i64: 128, 128>}, {pipeline_mode = #tpu.pipeline_mode<synchronous>, transform_indices = @transform_3, window_bounds = array<i64: 8, 128>}, {transform_indices = @transform_4, window_bounds = array<i64: 2, 128>}]} {
    %c0 = arith.constant 0 : index
    %c0_0 = arith.constant 0 : index
    %0 = vector.load %arg1[%c0, %c0_0] : memref<2x1024xbf16, #tpu.memory_space<vmem>>, vector<2x1024xbf16>
    %c0_1 = arith.constant 0 : index
    %c0_2 = arith.constant 0 : index
    %1 = vector.load %arg4[%c0_1, %c0_2] : memref<8x128xf32, #tpu.memory_space<vmem>>, vector<1x128xf32>
    %c1 = arith.constant 1 : index
    %c0_3 = arith.constant 0 : index
    %2 = vector.load %arg4[%c1, %c0_3] : memref<8x128xf32, #tpu.memory_space<vmem>>, vector<1x128xf32>
    %c0_4 = arith.constant 0 : index
    %c0_5 = arith.constant 0 : index
    %3 = vector.load %arg2[%c0_4, %c0_5] : memref<1024x128xbf16, #tpu.memory_space<vmem>>, vector<1024x128xbf16>
    %cst = arith.constant dense<0.000000e+00> : vector<2x128xf32>
    %4 = tpu.matmul %0, %3, %cst {dimension_numbers = #tpu.dot_dimension_numbers<[1], [0], [0], [1], [0, 0, 1, 1], [], []>} : vector<2x1024xbf16>, vector<1024x128xbf16>, vector<2x128xf32> -> vector<2x128xf32>
    %5 = vector.broadcast %1 : vector<1x128xf32> to vector<2x128xf32>
    %6 = arith.addf %4, %5 : vector<2x128xf32>
    %cst_6 = arith.constant 0.000000e+00 : f32
    %7 = vector.broadcast %cst_6 : f32 to vector<2x128xf32>
    %8 = arith.maximumf %6, %7 : vector<2x128xf32>
    %9 = arith.truncf %8 : vector<2x128xf32> to vector<2x128xbf16>
    %c0_7 = arith.constant 0 : index
    %c0_8 = arith.constant 0 : index
    %10 = vector.load %arg3[%c0_7, %c0_8] : memref<128x128xbf16, #tpu.memory_space<vmem>>, vector<128x128xbf16>
    %cst_9 = arith.constant dense<0.000000e+00> : vector<2x128xf32>
    %11 = tpu.matmul %9, %10, %cst_9 {dimension_numbers = #tpu.dot_dimension_numbers<[1], [0], [0], [1], [0, 0, 1, 1], [], []>} : vector<2x128xbf16>, vector<128x128xbf16>, vector<2x128xf32> -> vector<2x128xf32>
    %12 = vector.broadcast %2 : vector<1x128xf32> to vector<2x128xf32>
    %13 = arith.addf %11, %12 : vector<2x128xf32>
    %c0_10 = arith.constant 0 : index
    %c0_11 = arith.constant 0 : index
    %14 = vector.load %arg5[%c0_10, %c0_11] : memref<2x128xf32, #tpu.memory_space<vmem>>, vector<2x128xf32>
    tpu.vector_store %arg5[%c0_10, %c0_11], %13 {strides = array<i32>} : memref<2x128xf32, #tpu.memory_space<vmem>>, vector<2x128xf32>,
    return
  }
  func.func @transform_0(%arg0: i32) -> (i32, i32) {
    %c0_i32 = arith.constant 0 : i32
    %c0_i32_0 = arith.constant 0 : i32
    return %arg0, %c0_i32 : i32, i32
  }
  func.func @transform_1(%arg0: i32) -> (i32, i32) {
    %c0_i32 = arith.constant 0 : i32
    %c0_i32_0 = arith.constant 0 : i32
    %c0_i32_1 = arith.constant 0 : i32
    return %c0_i32, %c0_i32_0 : i32, i32
  }
  func.func @transform_2(%arg0: i32) -> (i32, i32) {
    %c0_i32 = arith.constant 0 : i32
    %c0_i32_0 = arith.constant 0 : i32
    %c0_i32_1 = arith.constant 0 : i32
    return %c0_i32, %c0_i32_0 : i32, i32
  }
  func.func @transform_3(%arg0: i32) -> (i32, i32) {
    %c0_i32 = arith.constant 0 : i32
    %c0_i32_0 = arith.constant 0 : i32
    %c0_i32_1 = arith.constant 0 : i32
    return %c0_i32, %c0_i32_0 : i32, i32
  }
  func.func @transform_4(%arg0: i32) -> (i32, i32) {
    %c0_i32 = arith.constant 0 : i32
    %c0_i32_0 = arith.constant 0 : i32
    return %arg0, %c0_i32 : i32, i32
  }
}

</mosaic_0001>

<llo_original>
// kernel: tpu_custom_call.1
$region0: #{tpu_custom_call.1}
  #allocation0 [shape = 'u32[]', space=smem, size = 0x4, offset = 0x4, fixed_abs, tag = 'smem constant byte address 0x4 - core index']
  #allocation1 [shape = 'u32[144,128]{1,0:T(1,128)}', space=vmem, size = 0x12000, scoped, tag = 'internal scratch']
  %s0 = inlined_call_operand.hbm [shape: bf16[2,1024], index: 0, kind: input, shape index: {}]
  %s1 = inlined_call_operand.hbm [shape: bf16[1024,128], index: 1, kind: input, shape index: {}]
  %s2 = inlined_call_operand.hbm [shape: bf16[128,128], index: 2, kind: input, shape index: {}]
  %s3 = inlined_call_operand.vmem [shape: f32[8,128], index: 3, kind: input, shape index: {}]
  %s4 = inlined_call_operand.hbm [shape: f32[2,128], index: 4, kind: output, shape index: {}]
  %s5 = sld [smem:[#allocation0]]
  $region38: #{tpu_custom_call.1} parent=0
    _
  %s7 = ssub.s32 1, %s5
  %s8 = scalar_select 0, %s7, %s5
  $region1: #{tpu_custom_call.1} parent=0
    #allocation2 [shape = 'u8[4096]{0}', space=vmem, size = 0x1000, scoped, tag = 'input window, operand 0, single buffered']
    #allocation3 [shape = 's32[1]{0}', space=sflag, size = 0x4, scoped, tag = 'scoped memory for tpu_custom_call.1']
    #allocation4 [shape = 's32[1]{0}', space=sflag, size = 0x4, scoped, tag = 'scoped memory for tpu_custom_call.1']
    #allocation5 [shape = 'u8[262144]{0}', space=vmem, size = 0x40000, scoped, tag = 'input window, operand 1, single buffered']
    #allocation6 [shape = 's32[1]{0}', space=sflag, size = 0x4, scoped, tag = 'scoped memory for tpu_custom_call.1']
    #allocation7 [shape = 'u8[32768]{0}', space=vmem, size = 0x8000, scoped, tag = 'input window, operand 2, single buffered']
    #allocation8 [shape = 'u8[1024]{0}', space=vmem, size = 0x400, scoped, tag = 'output window, operand 0, single buffered']
    %9 = vsyncpa [#allocation3], 0
    %10 = vsyncpa [#allocation6], 0
    %11 = vsyncpa [#allocation4], 0
    // Predicated region
    $region2: #{tpu_custom_call.1} parent=1 // pred_check
      _
    $region3: #{tpu_custom_call.1} parent=1 // pred_check_branch
      %13 = sbr.rel (0) target = $region5
    $region4: #{tpu_custom_call.1} parent=1 // pred_region
      %s15 = ssub.s32 128, 128
      %16 = vsyncadd [#allocation3], %s15
      %s18 = sshll.u32 [#allocation2], 4
      %s19 = int_to_ptr.vmem [resolvable:$true] %s18
      %21 = dma.hbm_to_vmem [thread:$0]  %s0, 128, %s19, [#allocation3]
    $region5: #{tpu_custom_call.1} parent=1 // pred_fallthru
      _
    // Predicated region
    $region6: #{tpu_custom_call.1} parent=1 // pred_check
      _
    $region7: #{tpu_custom_call.1} parent=1 // pred_check_branch
      %23 = sbr.rel (0) target = $region9
    $region8: #{tpu_custom_call.1} parent=1 // pred_region
      %s25 = ssub.s32 8192, 8192
      %26 = vsyncadd [#allocation6], %s25
      %s27 = sshll.u32 [#allocation5], 4
      %s28 = int_to_ptr.vmem [resolvable:$true] %s27
      %33 = dma.hbm_to_vmem [thread:$0]  %s1, 8192, %s28, [#allocation6], 64, 64, 4
    $region9: #{tpu_custom_call.1} parent=1 // pred_fallthru
      _
    // Predicated region
    $region10: #{tpu_custom_call.1} parent=1 // pred_check
      _
    $region11: #{tpu_custom_call.1} parent=1 // pred_check_branch
      %35 = sbr.rel (0) target = $region13
    $region12: #{tpu_custom_call.1} parent=1 // pred_region
      %s37 = ssub.s32 1024, 1024
      %38 = vsyncadd [#allocation6], %s37
      %s39 = sshll.u32 [#allocation7], 4
      %s40 = int_to_ptr.vmem [resolvable:$true] %s39
      %45 = dma.hbm_to_vmem [thread:$0]  %s2, 1024, %s40, [#allocation6], 64, 64, 4
    $region13: #{tpu_custom_call.1} parent=1 // pred_fallthru
      _
    // Predicated region
    $region14: #{tpu_custom_call.1} parent=1 // pred_check
      _
    $region15: #{tpu_custom_call.1} parent=1 // pred_check_branch
      %47 = sbr.rel (0) target = $region17
    $region16: #{tpu_custom_call.1} parent=1 // pred_region
      _
    $region17: #{tpu_custom_call.1} parent=1 // pred_fallthru
      _
    // Predicated region
    $region18: #{tpu_custom_call.1} parent=1 // pred_check
      _
    $region19: #{tpu_custom_call.1} parent=1 // pred_check_branch
      %49 = sbr.rel (0) target = $region21
    $region20: #{tpu_custom_call.1} parent=1 // pred_region
      %50 = dma.done [#allocation3], 128
    $region21: #{tpu_custom_call.1} parent=1 // pred_fallthru
      _
    // Predicated region
    $region22: #{tpu_custom_call.1} parent=1 // pred_check
      _
    $region23: #{tpu_custom_call.1} parent=1 // pred_check_branch
      %52 = sbr.rel (0) target = $region25
    $region24: #{tpu_custom_call.1} parent=1 // pred_region
      %53 = dma.done [#allocation6], 8192
    $region25: #{tpu_custom_call.1} parent=1 // pred_fallthru
      _
    // Predicated region
    $region26: #{tpu_custom_call.1} parent=1 // pred_check
      _
    $region27: #{tpu_custom_call.1} parent=1 // pred_check_branch
      %55 = sbr.rel (0) target = $region29
    $region28: #{tpu_custom_call.1} parent=1 // pred_region
      %56 = dma.done [#allocation6], 1024
    $region29: #{tpu_custom_call.1} parent=1 // pred_fallthru
      _
    %v58 = vld [vmem:[#allocation2] sm:$0xff]
    %v59 = vld [vmem:[%s3] sm:$0x1]
    %v60 = vld [vmem:[%s3 + $0x1] sm:$0x1]
    %v61 = vld [vmem:[#allocation5] sm:$0xf]
    %v62 = vld [vmem:[#allocation5 + $0x4] sm:$0xf]
    %v63 = vld [vmem:[#allocation5 + $0x8] sm:$0xf]
    %v64 = vld [vmem:[#allocation5 + $0xc] sm:$0xf]
    %v65 = vld [vmem:[#allocation5 + $0x10] sm:$0xf]
    %v66 = vld [vmem:[#allocation5 + $0x14] sm:$0xf]
    %v67 = vld [vmem:[#allocation5 + $0x18] sm:$0xf]
    %v68 = vld [vmem:[#allocation5 + $0x1c] sm:$0xf]
    %v69 = vld [vmem:[#allocation5 + $0x20] sm:$0xf]
    %v70 = vld [vmem:[#allocation5 + $0x24] sm:$0xf]
    %v71 = vld [vmem:[#allocation5 + $0x28] sm:$0xf]
    %v72 = vld [vmem:[#allocation5 + $0x2c] sm:$0xf]
    %v73 = vld [vmem:[#allocation5 + $0x30] sm:$0xf]
    %v74 = vld [vmem:[#allocation5 + $0x34] sm:$0xf]
    %v75 = vld [vmem:[#allocation5 + $0x38] sm:$0xf]
    %v76 = vld [vmem:[#allocation5 + $0x3c] sm:$0xf]
    %v77 = vld [vmem:[#allocation5 + $0x40] sm:$0xf]
    %v78 = vld [vmem:[#allocation5 + $0x44] sm:$0xf]
    %v79 = vld [vmem:[#allocation5 + $0x48] sm:$0xf]
    %v80 = vld [vmem:[#allocation5 + $0x4c] sm:$0xf]
    %v81 = vld [vmem:[#allocation5 + $0x50] sm:$0xf]
    %v82 = vld [vmem:[#allocation5 + $0x54] sm:$0xf]
    %v83 = vld [vmem:[#allocation5 + $0x58] sm:$0xf]
    %v84 = vld [vmem:[#allocation5 + $0x5c] sm:$0xf]
    %v85 = vld [vmem:[#allocation5 + $0x60] sm:$0xf]
    %v86 = vld [vmem:[#allocation5 + $0x64] sm:$0xf]
    %v87 = vld [vmem:[#allocation5 + $0x68] sm:$0xf]
    %v88 = vld [vmem:[#allocation5 + $0x6c] sm:$0xf]
    %v89 = vld [vmem:[#allocation5 + $0x70] sm:$0xf]
    %v90 = vld [vmem:[#allocation5 + $0x74] sm:$0xf]
    %v91 = vld [vmem:[#allocation5 + $0x78] sm:$0xf]
    %v92 = vld [vmem:[#allocation5 + $0x7c] sm:$0xf]
    %v93 = vld [vmem:[#allocation5 + $0x80] sm:$0xf]
    %v94 = vld [vmem:[#allocation5 + $0x84] sm:$0xf]
    %v95 = vld [vmem:[#allocation5 + $0x88] sm:$0xf]
    %v96 = vld [vmem:[#allocation5 + $0x8c] sm:$0xf]
    %v97 = vld [vmem:[#allocation5 + $0x90] sm:$0xf]
    %v98 = vld [vmem:[#allocation5 + $0x94] sm:$0xf]
    %v99 = vld [vmem:[#allocation5 + $0x98] sm:$0xf]
    %v100 = vld [vmem:[#allocation5 + $0x9c] sm:$0xf]
    %v101 = vld [vmem:[#allocation5 + $0xa0] sm:$0xf]
    %v102 = vld [vmem:[#allocation5 + $0xa4] sm:$0xf]
    %v103 = vld [vmem:[#allocation5 + $0xa8] sm:$0xf]
    %v104 = vld [vmem:[#allocation5 + $0xac] sm:$0xf]
    %v105 = vld [vmem:[#allocation5 + $0xb0] sm:$0xf]
    %v106 = vld [vmem:[#allocation5 + $0xb4] sm:$0xf]
    %v107 = vld [vmem:[#allocation5 + $0xb8] sm:$0xf]
    %v108 = vld [vmem:[#allocation5 + $0xbc] sm:$0xf]
    %v109 = vld [vmem:[#allocation5 + $0xc0] sm:$0xf]
    %v110 = vld [vmem:[#allocation5 + $0xc4] sm:$0xf]
    %v111 = vld [vmem:[#allocation5 + $0xc8] sm:$0xf]
    %v112 = vld [vmem:[#allocation5 + $0xcc] sm:$0xf]
    %v113 = vld [vmem:[#allocation5 + $0xd0] sm:$0xf]
    %v114 = vld [vmem:[#allocation5 + $0xd4] sm:$0xf]
    %v115 = vld [vmem:[#allocation5 + $0xd8] sm:$0xf]
    %v116 = vld [vmem:[#allocation5 + $0xdc] sm:$0xf]
    %v117 = vld [vmem:[#allocation5 + $0xe0] sm:$0xf]
    %v118 = vld [vmem:[#allocation5 + $0xe4] sm:$0xf]
    %v119 = vld [vmem:[#allocation5 + $0xe8] sm:$0xf]
    %v120 = vld [vmem:[#allocation5 + $0xec] sm:$0xf]
    %v121 = vld [vmem:[#allocation5 + $0xf0] sm:$0xf]
    %v122 = vld [vmem:[#allocation5 + $0xf4] sm:$0xf]
    %v123 = vld [vmem:[#allocation5 + $0xf8] sm:$0xf]
    %v124 = vld [vmem:[#allocation5 + $0xfc] sm:$0xf]
    %v125 = vld [vmem:[#allocation5 + $0x100] sm:$0xf]
    %v126 = vld [vmem:[#allocation5 + $0x104] sm:$0xf]
    %v127 = vld [vmem:[#allocation5 + $0x108] sm:$0xf]
    %v128 = vld [vmem:[#allocation5 + $0x10c] sm:$0xf]
    %v129 = vld [vmem:[#allocation5 + $0x110] sm:$0xf]
    %v130 = vld [vmem:[#allocation5 + $0x114] sm:$0xf]
    %v131 = vld [vmem:[#allocation5 + $0x118] sm:$0xf]
    %v132 = vld [vmem:[#allocation5 + $0x11c] sm:$0xf]
    %v133 = vld [vmem:[#allocation5 + $0x120] sm:$0xf]
    %v134 = vld [vmem:[#allocation5 + $0x124] sm:$0xf]
    %v135 = vld [vmem:[#allocation5 + $0x128] sm:$0xf]
    %v136 = vld [vmem:[#allocation5 + $0x12c] sm:$0xf]
    %v137 = vld [vmem:[#allocation5 + $0x130] sm:$0xf]
    %v138 = vld [vmem:[#allocation5 + $0x134] sm:$0xf]
    %v139 = vld [vmem:[#allocation5 + $0x138] sm:$0xf]
    %v140 = vld [vmem:[#allocation5 + $0x13c] sm:$0xf]
    %v141 = vld [vmem:[#allocation5 + $0x140] sm:$0xf]
    %v142 = vld [vmem:[#allocation5 + $0x144] sm:$0xf]
    %v143 = vld [vmem:[#allocation5 + $0x148] sm:$0xf]
    %v144 = vld [vmem:[#allocation5 + $0x14c] sm:$0xf]
    %v145 = vld [vmem:[#allocation5 + $0x150] sm:$0xf]
    %v146 = vld [vmem:[#allocation5 + $0x154] sm:$0xf]
    %v147 = vld [vmem:[#allocation5 + $0x158] sm:$0xf]
    %v148 = vld [vmem:[#allocation5 + $0x15c] sm:$0xf]
    %v149 = vld [vmem:[#allocation5 + $0x160] sm:$0xf]
    %v150 = vld [vmem:[#allocation5 + $0x164] sm:$0xf]
    %v151 = vld [vmem:[#allocation5 + $0x168] sm:$0xf]
    %v152 = vld [vmem:[#allocation5 + $0x16c] sm:$0xf]
    %v153 = vld [vmem:[#allocation5 + $0x170] sm:$0xf]
    %v154 = vld [vmem:[#allocation5 + $0x174] sm:$0xf]
    %v155 = vld [vmem:[#allocation5 + $0x178] sm:$0xf]
    %v156 = vld [vmem:[#allocation5 + $0x17c] sm:$0xf]
    %v157 = vld [vmem:[#allocation5 + $0x180] sm:$0xf]
    %v158 = vld [vmem:[#allocation5 + $0x184] sm:$0xf]
    %v159 = vld [vmem:[#allocation5 + $0x188] sm:$0xf]
    %v160 = vld [vmem:[#allocation5 + $0x18c] sm:$0xf]
    %v161 = vld [vmem:[#allocation5 + $0x190] sm:$0xf]
    %v162 = vld [vmem:[#allocation5 + $0x194] sm:$0xf]
    %v163 = vld [vmem:[#allocation5 + $0x198] sm:$0xf]
    %v164 = vld [vmem:[#allocation5 + $0x19c] sm:$0xf]
    %v165 = vld [vmem:[#allocation5 + $0x1a0] sm:$0xf]
    %v166 = vld [vmem:[#allocation5 + $0x1a4] sm:$0xf]
    %v167 = vld [vmem:[#allocation5 + $0x1a8] sm:$0xf]
    %v168 = vld [vmem:[#allocation5 + $0x1ac] sm:$0xf]
    %v169 = vld [vmem:[#allocation5 + $0x1b0] sm:$0xf]
    %v170 = vld [vmem:[#allocation5 + $0x1b4] sm:$0xf]
    %v171 = vld [vmem:[#allocation5 + $0x1b8] sm:$0xf]
    %v172 = vld [vmem:[#allocation5 + $0x1bc] sm:$0xf]
    %v173 = vld [vmem:[#allocation5 + $0x1c0] sm:$0xf]
    %v174 = vld [vmem:[#allocation5 + $0x1c4] sm:$0xf]
    %v175 = vld [vmem:[#allocation5 + $0x1c8] sm:$0xf]
    %v176 = vld [vmem:[#allocation5 + $0x1cc] sm:$0xf]
    %v177 = vld [vmem:[#allocation5 + $0x1d0] sm:$0xf]
    %v178 = vld [vmem:[#allocation5 + $0x1d4] sm:$0xf]
    %v179 = vld [vmem:[#allocation5 + $0x1d8] sm:$0xf]
    %v180 = vld [vmem:[#allocation5 + $0x1dc] sm:$0xf]
    %v181 = vld [vmem:[#allocation5 + $0x1e0] sm:$0xf]
    %v182 = vld [vmem:[#allocation5 + $0x1e4] sm:$0xf]
    %v183 = vld [vmem:[#allocation5 + $0x1e8] sm:$0xf]
    %v184 = vld [vmem:[#allocation5 + $0x1ec] sm:$0xf]
    %v185 = vld [vmem:[#allocation5 + $0x1f0] sm:$0xf]
    %v186 = vld [vmem:[#allocation5 + $0x1f4] sm:$0xf]
    %v187 = vld [vmem:[#allocation5 + $0x1f8] sm:$0xf]
    %v188 = vld [vmem:[#allocation5 + $0x1fc] sm:$0xf]
    %v189 = vlaneseq
    %v190 = vshrl.u32 %v189, 7
    %v191 = vsub.s32 0, %v190
    %v192 = vrot.slane %v59, %v191
    %v194 = vcombine.high %v58, %v58
    %v196 = vunpack.c.l.s4 1966171168
    %v197 = vunpack.c.0.s8 %v196
    %v198 = vlaneseq
    %v199 = vshrl.u32 %v198, 7
    %v200 = vsub.s32 %v197, %v199
    %v201 = vrot.slane %v58, %v200
    %v203 = vunpack.c.l.s4 1966171168
    %v204 = vunpack.c.0.s8 %v203
    %v205 = vlaneseq
    %v206 = vshrl.u32 %v205, 7
    %v207 = vsub.s32 %v204, %v206
    %v208 = vrot.slane %v194, %v207
    %v209 = vcombine.high %v201, %v201
    %v210 = vcombine.high %v208, %v208
    %v212 = vunpack.c.l.s4 1966171168
    %v213 = vunpack.c.0.s8 %v212
    %v214 = vlaneseq
    %v215 = vshrl.u32 %v214, 7
    %v216 = vsub.s32 %v213, %v215
    %v217 = vrot.slane %v201, %v216
    %v219 = vunpack.c.l.s4 1966171168
    %v220 = vunpack.c.0.s8 %v219
    %v221 = vlaneseq
    %v222 = vshrl.u32 %v221, 7
    %v223 = vsub.s32 %v220, %v222
    %v224 = vrot.slane %v208, %v223
    %v226 = vunpack.c.l.s4 1966171168
    %v227 = vunpack.c.0.s8 %v226
    %v228 = vlaneseq
    %v229 = vshrl.u32 %v228, 7
    %v230 = vsub.s32 %v227, %v229
    %v231 = vrot.slane %v209, %v230
    %v233 = vunpack.c.l.s4 1966171168
    %v234 = vunpack.c.0.s8 %v233
    %v235 = vlaneseq
    %v236 = vshrl.u32 %v235, 7
    %v237 = vsub.s32 %v234, %v236
    %v238 = vrot.slane %v210, %v237
    %v239 = vcombine.high %v217, %v217
    %v240 = vcombine.high %v224, %v224
    %v241 = vcombine.high %v231, %v231
    %v242 = vcombine.high %v238, %v238
    %v379 = vunpack.c.l.b16 %v61
    %v380 = vunpack.c.l.b16 %v62
    %v381 = vunpack.c.l.b16 %v63
    %v382 = vunpack.c.l.b16 %v64
    %v383 = vunpack.c.l.b16 %v65
    %v384 = vunpack.c.l.b16 %v66
    %v385 = vunpack.c.l.b16 %v67
    %v386 = vunpack.c.l.b16 %v68
    %v387 = vunpack.c.l.b16 %v69
    %v388 = vunpack.c.l.b16 %v70
    %v389 = vunpack.c.l.b16 %v71
    %v390 = vunpack.c.l.b16 %v72
    %v391 = vunpack.c.l.b16 %v73
    %v392 = vunpack.c.l.b16 %v74
    %v393 = vunpack.c.l.b16 %v75
    %v394 = vunpack.c.l.b16 %v76
    %v395 = vunpack.c.l.b16 %v77
    %v396 = vunpack.c.l.b16 %v78
    %v397 = vunpack.c.l.b16 %v79
    %v398 = vunpack.c.l.b16 %v80
    %v399 = vunpack.c.l.b16 %v81
    %v400 = vunpack.c.l.b16 %v82
    %v401 = vunpack.c.l.b16 %v83
    %v402 = vunpack.c.l.b16 %v84
    %v403 = vunpack.c.l.b16 %v85
    %v404 = vunpack.c.l.b16 %v86
    %v405 = vunpack.c.l.b16 %v87
    %v406 = vunpack.c.l.b16 %v88
    %v407 = vunpack.c.l.b16 %v89
    %v408 = vunpack.c.l.b16 %v90
    %v409 = vunpack.c.l.b16 %v91
    %v410 = vunpack.c.l.b16 %v92
    %v411 = vunpack.c.l.b16 %v93
    %v412 = vunpack.c.l.b16 %v94
    %v413 = vunpack.c.l.b16 %v95
    %v414 = vunpack.c.l.b16 %v96
    %v415 = vunpack.c.l.b16 %v97
    %v416 = vunpack.c.l.b16 %v98
    %v417 = vunpack.c.l.b16 %v99
    %v418 = vunpack.c.l.b16 %v100
    %v419 = vunpack.c.l.b16 %v101
    %v420 = vunpack.c.l.b16 %v102
    %v421 = vunpack.c.l.b16 %v103
    %v422 = vunpack.c.l.b16 %v104
    %v423 = vunpack.c.l.b16 %v105
    %v424 = vunpack.c.l.b16 %v106
    %v425 = vunpack.c.l.b16 %v107
    %v426 = vunpack.c.l.b16 %v108
    %v427 = vunpack.c.l.b16 %v109
    %v428 = vunpack.c.l.b16 %v110
    %v429 = vunpack.c.l.b16 %v111
    %v430 = vunpack.c.l.b16 %v112
    %v431 = vunpack.c.l.b16 %v113
    %v432 = vunpack.c.l.b16 %v114
    %v433 = vunpack.c.l.b16 %v115
    %v434 = vunpack.c.l.b16 %v116
    %v435 = vunpack.c.l.b16 %v117
    %v436 = vunpack.c.l.b16 %v118
    %v437 = vunpack.c.l.b16 %v119
    %v438 = vunpack.c.l.b16 %v120
    %v439 = vunpack.c.l.b16 %v121
    %v440 = vunpack.c.l.b16 %v122
    %v441 = vunpack.c.l.b16 %v123
    %v442 = vunpack.c.l.b16 %v124
    %v443 = vunpack.c.l.b16 %v125
    %v444 = vunpack.c.l.b16 %v126
    %v445 = vunpack.c.l.b16 %v127
    %v446 = vunpack.c.l.b16 %v128
    %v447 = vunpack.c.l.b16 %v129
    %v448 = vunpack.c.l.b16 %v130
    %v449 = vunpack.c.l.b16 %v131
    %v450 = vunpack.c.l.b16 %v132
    %v451 = vunpack.c.l.b16 %v133
    %v452 = vunpack.c.l.b16 %v134
    %v453 = vunpack.c.l.b16 %v135
    %v454 = vunpack.c.l.b16 %v136
    %v455 = vunpack.c.l.b16 %v137
    %v456 = vunpack.c.l.b16 %v138
    %v457 = vunpack.c.l.b16 %v139
    %v458 = vunpack.c.l.b16 %v140
    %v459 = vunpack.c.l.b16 %v141
    %v460 = vunpack.c.l.b16 %v142
    %v461 = vunpack.c.l.b16 %v143
    %v462 = vunpack.c.l.b16 %v144
    %v463 = vunpack.c.l.b16 %v145
    %v464 = vunpack.c.l.b16 %v146
    %v465 = vunpack.c.l.b16 %v147
    %v466 = vunpack.c.l.b16 %v148
    %v467 = vunpack.c.l.b16 %v149
    %v468 = vunpack.c.l.b16 %v150
    %v469 = vunpack.c.l.b16 %v151
    %v470 = vunpack.c.l.b16 %v152
    %v471 = vunpack.c.l.b16 %v153
    %v472 = vunpack.c.l.b16 %v154
    %v473 = vunpack.c.l.b16 %v155
    %v474 = vunpack.c.l.b16 %v156
    %v475 = vunpack.c.l.b16 %v157
    %v476 = vunpack.c.l.b16 %v158
    %v477 = vunpack.c.l.b16 %v159
    %v478 = vunpack.c.l.b16 %v160
    %v479 = vunpack.c.l.b16 %v161
    %v480 = vunpack.c.l.b16 %v162
    %v481 = vunpack.c.l.b16 %v163
    %v482 = vunpack.c.l.b16 %v164
    %v483 = vunpack.c.l.b16 %v165
    %v484 = vunpack.c.l.b16 %v166
    %v485 = vunpack.c.l.b16 %v167
    %v486 = vunpack.c.l.b16 %v168
    %v487 = vunpack.c.l.b16 %v169
    %v488 = vunpack.c.l.b16 %v170
    %v489 = vunpack.c.l.b16 %v171
    %v490 = vunpack.c.l.b16 %v172
    %v491 = vunpack.c.l.b16 %v173
    %v492 = vunpack.c.l.b16 %v174
    %v493 = vunpack.c.l.b16 %v175
    %v494 = vunpack.c.l.b16 %v176
    %v495 = vunpack.c.l.b16 %v177
    %v496 = vunpack.c.l.b16 %v178
    %v497 = vunpack.c.l.b16 %v179
    %v498 = vunpack.c.l.b16 %v180
    %v499 = vunpack.c.l.b16 %v181
    %v500 = vunpack.c.l.b16 %v182
    %v501 = vunpack.c.l.b16 %v183
    %v502 = vunpack.c.l.b16 %v184
    %v503 = vunpack.c.l.b16 %v185
    %v504 = vunpack.c.l.b16 %v186
    %v505 = vunpack.c.l.b16 %v187
    %v506 = vunpack.c.l.b16 %v188
    %v507 = vpack.c.b16 %v380, %v379
    %v508 = vpack.c.b16 %v382, %v381
    %v509 = vpack.c.b16 %v384, %v383
    %v510 = vpack.c.b16 %v386, %v385
    %v511 = vpack.c.b16 %v388, %v387
    %v512 = vpack.c.b16 %v390, %v389
    %v513 = vpack.c.b16 %v392, %v391
    %v514 = vpack.c.b16 %v394, %v393
    %v515 = vpack.c.b16 %v396, %v395
    %v516 = vpack.c.b16 %v398, %v397
    %v517 = vpack.c.b16 %v400, %v399
    %v518 = vpack.c.b16 %v402, %v401
    %v519 = vpack.c.b16 %v404, %v403
    %v520 = vpack.c.b16 %v406, %v405
    %v521 = vpack.c.b16 %v408, %v407
    %v522 = vpack.c.b16 %v410, %v409
    %v523 = vpack.c.b16 %v412, %v411
    %v524 = vpack.c.b16 %v414, %v413
    %v525 = vpack.c.b16 %v416, %v415
    %v526 = vpack.c.b16 %v418, %v417
    %v527 = vpack.c.b16 %v420, %v419
    %v528 = vpack.c.b16 %v422, %v421
    %v529 = vpack.c.b16 %v424, %v423
    %v530 = vpack.c.b16 %v426, %v425
    %v531 = vpack.c.b16 %v428, %v427
    %v532 = vpack.c.b16 %v430, %v429
    %v533 = vpack.c.b16 %v432, %v431
    %v534 = vpack.c.b16 %v434, %v433
    %v535 = vpack.c.b16 %v436, %v435
    %v536 = vpack.c.b16 %v438, %v437
    %v537 = vpack.c.b16 %v440, %v439
    %v538 = vpack.c.b16 %v442, %v441
    %v539 = vpack.c.b16 %v444, %v443
    %v540 = vpack.c.b16 %v446, %v445
    %v541 = vpack.c.b16 %v448, %v447
    %v542 = vpack.c.b16 %v450, %v449
    %v543 = vpack.c.b16 %v452, %v451
    %v544 = vpack.c.b16 %v454, %v453
    %v545 = vpack.c.b16 %v456, %v455
    %v546 = vpack.c.b16 %v458, %v457
    %v547 = vpack.c.b16 %v460, %v459
    %v548 = vpack.c.b16 %v462, %v461
    %v549 = vpack.c.b16 %v464, %v463
    %v550 = vpack.c.b16 %v466, %v465
    %v551 = vpack.c.b16 %v468, %v467
    %v552 = vpack.c.b16 %v470, %v469
    %v553 = vpack.c.b16 %v472, %v471
    %v554 = vpack.c.b16 %v474, %v473
    %v555 = vpack.c.b16 %v476, %v475
    %v556 = vpack.c.b16 %v478, %v477
    %v557 = vpack.c.b16 %v480, %v479
    %v558 = vpack.c.b16 %v482, %v481
    %v559 = vpack.c.b16 %v484, %v483
    %v560 = vpack.c.b16 %v486, %v485
    %v561 = vpack.c.b16 %v488, %v487
    %v562 = vpack.c.b16 %v490, %v489
    %v563 = vpack.c.b16 %v492, %v491
    %v564 = vpack.c.b16 %v494, %v493
    %v565 = vpack.c.b16 %v496, %v495
    %v566 = vpack.c.b16 %v498, %v497
    %v567 = vpack.c.b16 %v500, %v499
    %v568 = vpack.c.b16 %v502, %v501
    %v569 = vpack.c.b16 %v504, %v503
    %v570 = vpack.c.b16 %v506, %v505
    %635 = vmatprep.subr.bf16.mxu0 0
    %636 = vmatpush1.bf16.msra.mxu0 %v507
    %637 = vmatprep.subr.bf16.mxu0 0
    %638 = vmatpush1.bf16.msra.mxu0 %v508
    %639 = vmatprep.subr.bf16.mxu0 0
    %640 = vmatpush1.bf16.msra.mxu0 %v509
    %641 = vmatprep.subr.bf16.mxu0 0
    %642 = vmatpush1.bf16.msra.mxu0 %v510
    %643 = vmatprep.subr.bf16.mxu0 0
    %644 = vmatpush1.bf16.msra.mxu0 %v511
    %645 = vmatprep.subr.bf16.mxu0 0
    %646 = vmatpush1.bf16.msra.mxu0 %v512
    %647 = vmatprep.subr.bf16.mxu0 0
    %648 = vmatpush1.bf16.msra.mxu0 %v513
    %649 = vmatprep.subr.bf16.mxu0 0
    %650 = vmatpush1.bf16.msra.mxu0 %v514
    %651 = vmatprep.subr.bf16.mxu0 0
    %652 = vmatpush1.bf16.msra.mxu0 %v515
    %653 = vmatprep.subr.bf16.mxu0 0
    %654 = vmatpush1.bf16.msra.mxu0 %v516
    %655 = vmatprep.subr.bf16.mxu0 0
    %656 = vmatpush1.bf16.msra.mxu0 %v517
    %657 = vmatprep.subr.bf16.mxu0 0
    %658 = vmatpush1.bf16.msra.mxu0 %v518
    %659 = vmatprep.subr.bf16.mxu0 0
    %660 = vmatpush1.bf16.msra.mxu0 %v519
    %661 = vmatprep.subr.bf16.mxu0 0
    %662 = vmatpush1.bf16.msra.mxu0 %v520
    %663 = vmatprep.subr.bf16.mxu0 0
    %664 = vmatpush1.bf16.msra.mxu0 %v521
    %665 = vmatprep.subr.bf16.mxu0 0
    %666 = vmatpush1.bf16.msra.mxu0 %v522
    %667 = vmatprep.mubr.bf16.mxu0 %v231
    %668 = vmatmul.mubr.bf16.gmra.mrb[0].mxu0 %v217
    %v669 = vpop.f32.mrb[0].mxu0
    %v670 = vadd.f32 %v192, %v669
    %v671 = vpop.f32.mrb[0].mxu0
    %v672 = vpop.f32.mrb[0].mxu0
    %v673 = vpop.f32.mrb[0].mxu0
    %674 = vdwg.mxu0
    %675 = vmatprep.subr.bf16.mxu0 0
    %676 = vmatpush1.bf16.msra.mxu0 %v523
    %677 = vmatprep.subr.bf16.mxu0 0
    %678 = vmatpush1.bf16.msra.mxu0 %v524
    %679 = vmatprep.subr.bf16.mxu0 0
    %680 = vmatpush1.bf16.msra.mxu0 %v525
    %681 = vmatprep.subr.bf16.mxu0 0
    %682 = vmatpush1.bf16.msra.mxu0 %v526
    %683 = vmatprep.subr.bf16.mxu0 0
    %684 = vmatpush1.bf16.msra.mxu0 %v527
    %685 = vmatprep.subr.bf16.mxu0 0
    %686 = vmatpush1.bf16.msra.mxu0 %v528
    %687 = vmatprep.subr.bf16.mxu0 0
    %688 = vmatpush1.bf16.msra.mxu0 %v529
    %689 = vmatprep.subr.bf16.mxu0 0
    %690 = vmatpush1.bf16.msra.mxu0 %v530
    %691 = vmatprep.subr.bf16.mxu0 0
    %692 = vmatpush1.bf16.msra.mxu0 %v531
    %693 = vmatprep.subr.bf16.mxu0 0
    %694 = vmatpush1.bf16.msra.mxu0 %v532
    %695 = vmatprep.subr.bf16.mxu0 0
    %696 = vmatpush1.bf16.msra.mxu0 %v533
    %697 = vmatprep.subr.bf16.mxu0 0
    %698 = vmatpush1.bf16.msra.mxu0 %v534
    %699 = vmatprep.subr.bf16.mxu0 0
    %700 = vmatpush1.bf16.msra.mxu0 %v535
    %701 = vmatprep.subr.bf16.mxu0 0
    %702 = vmatpush1.bf16.msra.mxu0 %v536
    %703 = vmatprep.subr.bf16.mxu0 0
    %704 = vmatpush1.bf16.msra.mxu0 %v537
    %705 = vmatprep.subr.bf16.mxu0 0
    %706 = vmatpush1.bf16.msra.mxu0 %v538
    %707 = vmatprep.mubr.bf16.mxu0 %v241
    %708 = vmatmul.mubr.bf16.gmra.mrb[0].mxu0 %v239
    %v709 = vpop.f32.mrb[0].mxu0
    %v710 = vadd.f32 %v670, %v709
    %v711 = vpop.f32.mrb[0].mxu0
    %v712 = vpop.f32.mrb[0].mxu0
    %v713 = vpop.f32.mrb[0].mxu0
    %714 = vdwg.mxu0
    %715 = vmatprep.subr.bf16.mxu0 0
    %716 = vmatpush1.bf16.msra.mxu0 %v539
    %717 = vmatprep.subr.bf16.mxu0 0
    %718 = vmatpush1.bf16.msra.mxu0 %v540
    %719 = vmatprep.subr.bf16.mxu0 0
    %720 = vmatpush1.bf16.msra.mxu0 %v541
    %721 = vmatprep.subr.bf16.mxu0 0
    %722 = vmatpush1.bf16.msra.mxu0 %v542
    %723 = vmatprep.subr.bf16.mxu0 0
    %724 = vmatpush1.bf16.msra.mxu0 %v543
    %725 = vmatprep.subr.bf16.mxu0 0
    %726 = vmatpush1.bf16.msra.mxu0 %v544
    %727 = vmatprep.subr.bf16.mxu0 0
    %728 = vmatpush1.bf16.msra.mxu0 %v545
    %729 = vmatprep.subr.bf16.mxu0 0
    %730 = vmatpush1.bf16.msra.mxu0 %v546
    %731 = vmatprep.subr.bf16.mxu0 0
    %732 = vmatpush1.bf16.msra.mxu0 %v547
    %733 = vmatprep.subr.bf16.mxu0 0
    %734 = vmatpush1.bf16.msra.mxu0 %v548
    %735 = vmatprep.subr.bf16.mxu0 0
    %736 = vmatpush1.bf16.msra.mxu0 %v549
    %737 = vmatprep.subr.bf16.mxu0 0
    %738 = vmatpush1.bf16.msra.mxu0 %v550
    %739 = vmatprep.subr.bf16.mxu0 0
    %740 = vmatpush1.bf16.msra.mxu0 %v551
    %741 = vmatprep.subr.bf16.mxu0 0
    %742 = vmatpush1.bf16.msra.mxu0 %v552
    %743 = vmatprep.subr.bf16.mxu0 0
    %744 = vmatpush1.bf16.msra.mxu0 %v553
    %745 = vmatprep.subr.bf16.mxu0 0
    %746 = vmatpush1.bf16.msra.mxu0 %v554
    %747 = vmatprep.mubr.bf16.mxu0 %v238
    %748 = vmatmul.mubr.bf16.gmra.mrb[0].mxu0 %v224
    %v749 = vpop.f32.mrb[0].mxu0
    %v750 = vadd.f32 %v710, %v749
    %v751 = vpop.f32.mrb[0].mxu0
    %v752 = vpop.f32.mrb[0].mxu0
    %v753 = vpop.f32.mrb[0].mxu0
    %754 = vdwg.mxu0
    %755 = vmatprep.subr.bf16.mxu0 0
    %756 = vmatpush1.bf16.msra.mxu0 %v555
    %757 = vmatprep.subr.bf16.mxu0 0
    %758 = vmatpush1.bf16.msra.mxu0 %v556
    %759 = vmatprep.subr.bf16.mxu0 0
    %760 = vmatpush1.bf16.msra.mxu0 %v557
    %761 = vmatprep.subr.bf16.mxu0 0
    %762 = vmatpush1.bf16.msra.mxu0 %v558
    %763 = vmatprep.subr.bf16.mxu0 0
    %764 = vmatpush1.bf16.msra.mxu0 %v559
    %765 = vmatprep.subr.bf16.mxu0 0
    %766 = vmatpush1.bf16.msra.mxu0 %v560
    %767 = vmatprep.subr.bf16.mxu0 0
    %768 = vmatpush1.bf16.msra.mxu0 %v561
    %769 = vmatprep.subr.bf16.mxu0 0
    %770 = vmatpush1.bf16.msra.mxu0 %v562
    %771 = vmatprep.subr.bf16.mxu0 0
    %772 = vmatpush1.bf16.msra.mxu0 %v563
    %773 = vmatprep.subr.bf16.mxu0 0
    %774 = vmatpush1.bf16.msra.mxu0 %v564
    %775 = vmatprep.subr.bf16.mxu0 0
    %776 = vmatpush1.bf16.msra.mxu0 %v565
    %777 = vmatprep.subr.bf16.mxu0 0
    %778 = vmatpush1.bf16.msra.mxu0 %v566
    %779 = vmatprep.subr.bf16.mxu0 0
    %780 = vmatpush1.bf16.msra.mxu0 %v567
    %781 = vmatprep.subr.bf16.mxu0 0
    %782 = vmatpush1.bf16.msra.mxu0 %v568
    %783 = vmatprep.subr.bf16.mxu0 0
    %784 = vmatpush1.bf16.msra.mxu0 %v569
    %785 = vmatprep.subr.bf16.mxu0 0
    %786 = vmatpush1.bf16.msra.mxu0 %v570
    %787 = vmatprep.mubr.bf16.mxu0 %v242
    %788 = vmatmul.mubr.bf16.gmra.mrb[0].mxu0 %v240
    %v789 = vpop.f32.mrb[0].mxu0
    %v790 = vadd.f32 %v750, %v789
    %v791 = vpop.f32.mrb[0].mxu0
    %v792 = vpop.f32.mrb[0].mxu0
    %v793 = vpop.f32.mrb[0].mxu0
    %794 = vdwg.mxu0
    %v795 = vmax.f32 %v790, 0.0
    %v796 = vpack.c.bf16 %v795, %v795
    %v797 = vld [vmem:[#allocation7] sm:$0xf]
    %v798 = vld [vmem:[#allocation7 + $0x4] sm:$0xf]
    %v799 = vld [vmem:[#allocation7 + $0x8] sm:$0xf]
    %v800 = vld [vmem:[#allocation7 + $0xc] sm:$0xf]
    %v801 = vld [vmem:[#allocation7 + $0x10] sm:$0xf]
    %v802 = vld [vmem:[#allocation7 + $0x14] sm:$0xf]
    %v803 = vld [vmem:[#allocation7 + $0x18] sm:$0xf]
    %v804 = vld [vmem:[#allocation7 + $0x1c] sm:$0xf]
    %v805 = vld [vmem:[#allocation7 + $0x20] sm:$0xf]
    %v806 = vld [vmem:[#allocation7 + $0x24] sm:$0xf]
    %v807 = vld [vmem:[#allocation7 + $0x28] sm:$0xf]
    %v808 = vld [vmem:[#allocation7 + $0x2c] sm:$0xf]
    %v809 = vld [vmem:[#allocation7 + $0x30] sm:$0xf]
    %v810 = vld [vmem:[#allocation7 + $0x34] sm:$0xf]
    %v811 = vld [vmem:[#allocation7 + $0x38] sm:$0xf]
    %v812 = vld [vmem:[#allocation7 + $0x3c] sm:$0xf]
    %v813 = vlaneseq
    %v814 = vshrl.u32 %v813, 7
    %v815 = vsub.s32 0, %v814
    %v816 = vrot.slane %v60, %v815
    %v833 = vunpack.c.l.b16 %v797
    %v834 = vunpack.c.l.b16 %v798
    %v835 = vunpack.c.l.b16 %v799
    %v836 = vunpack.c.l.b16 %v800
    %v837 = vunpack.c.l.b16 %v801
    %v838 = vunpack.c.l.b16 %v802
    %v839 = vunpack.c.l.b16 %v803
    %v840 = vunpack.c.l.b16 %v804
    %v841 = vunpack.c.l.b16 %v805
    %v842 = vunpack.c.l.b16 %v806
    %v843 = vunpack.c.l.b16 %v807
    %v844 = vunpack.c.l.b16 %v808
    %v845 = vunpack.c.l.b16 %v809
    %v846 = vunpack.c.l.b16 %v810
    %v847 = vunpack.c.l.b16 %v811
    %v848 = vunpack.c.l.b16 %v812
    %v849 = vpack.c.b16 %v834, %v833
    %v850 = vpack.c.b16 %v836, %v835
    %v851 = vpack.c.b16 %v838, %v837
    %v852 = vpack.c.b16 %v840, %v839
    %v853 = vpack.c.b16 %v842, %v841
    %v854 = vpack.c.b16 %v844, %v843
    %v855 = vpack.c.b16 %v846, %v845
    %v856 = vpack.c.b16 %v848, %v847
    %865 = vmatprep.subr.bf16.mxu0 0
    %866 = vmatpush1.bf16.msra.mxu0 %v849
    %867 = vmatprep.subr.bf16.mxu0 0
    %868 = vmatpush1.bf16.msra.mxu0 %v850
    %869 = vmatprep.subr.bf16.mxu0 0
    %870 = vmatpush1.bf16.msra.mxu0 %v851
    %871 = vmatprep.subr.bf16.mxu0 0
    %872 = vmatpush1.bf16.msra.mxu0 %v852
    %873 = vmatprep.subr.bf16.mxu0 0
    %874 = vmatpush1.bf16.msra.mxu0 %v853
    %875 = vmatprep.subr.bf16.mxu0 0
    %876 = vmatpush1.bf16.msra.mxu0 %v854
    %877 = vmatprep.subr.bf16.mxu0 0
    %878 = vmatpush1.bf16.msra.mxu0 %v855
    %879 = vmatprep.subr.bf16.mxu0 0
    %880 = vmatpush1.bf16.msra.mxu0 %v856
    %881 = vmatprep.subr.bf16.mxu0 0
    %882 = vmatpush1.bf16.msra.mxu0 0
    %883 = vmatprep.subr.bf16.mxu0 0
    %884 = vmatpush1.bf16.msra.mxu0 0
    %885 = vmatprep.subr.bf16.mxu0 0
    %886 = vmatpush1.bf16.msra.mxu0 0
    %887 = vmatprep.subr.bf16.mxu0 0
    %888 = vmatpush1.bf16.msra.mxu0 0
    %889 = vmatprep.subr.bf16.mxu0 0
    %890 = vmatpush1.bf16.msra.mxu0 0
    %891 = vmatprep.subr.bf16.mxu0 0
    %892 = vmatpush1.bf16.msra.mxu0 0
    %893 = vmatprep.subr.bf16.mxu0 0
    %894 = vmatpush1.bf16.msra.mxu0 0
    %895 = vmatprep.subr.bf16.mxu0 0
    %896 = vmatpush1.bf16.msra.mxu0 0
    %897 = vmatprep.mubr.bf16.mxu0 0
    %898 = vmatmul.mubr.bf16.gmra.mrb[0].mxu0 %v796
    %v899 = vpop.f32.mrb[0].mxu0
    %v900 = vadd.f32 %v816, %v899
    %v901 = vpop.f32.mrb[0].mxu0
    %v902 = vpop.f32.mrb[0].mxu0
    %v903 = vpop.f32.mrb[0].mxu0
    %904 = vdwg.mxu0
    %905 = vst [vmem:[#allocation8] sm:$0x3] %v900
    // Predicated region
    $region30: #{tpu_custom_call.1} parent=1 // pred_check
      _
    $region31: #{tpu_custom_call.1} parent=1 // pred_check_branch
      %907 = sbr.rel (0) target = $region33
    $region32: #{tpu_custom_call.1} parent=1 // pred_region
      %s909 = ssub.s32 32, 32
      %910 = vsyncadd [#allocation4], %s909
      %s912 = sshll.u32 [#allocation8], 4
      %s913 = int_to_ptr.vmem [resolvable:$true] %s912
      %915 = dma.vmem_to_hbm [thread:$0]  %s913, 32, %s4, [#allocation4]
    $region33: #{tpu_custom_call.1} parent=1 // pred_fallthru
      _
    // Predicated region
    $region34: #{tpu_custom_call.1} parent=1 // pred_check
      _
    $region35: #{tpu_custom_call.1} parent=1 // pred_check_branch
      %917 = sbr.rel (0) target = $region37
    $region36: #{tpu_custom_call.1} parent=1 // pred_region
      %918 = dma.done [#allocation4], 32
    $region37: #{tpu_custom_call.1} parent=1 // pred_fallthru
      _
    %919 = vsyncpa [#allocation3], 1
    %920 = vsyncpa [#allocation6], 1
    %921 = vsyncpa [#allocation4], 1

</llo_original>
